<compile_context>
chip_gen: v7x
topology: tpu7x:2x2x1
jax: 0.10.0
libtpu: 0.0.40
codegen_flags: <defaults>
</compile_context>

<pallas_src>
import functools

import jax
import jax.numpy as jnp
from jax.experimental import pallas as pl
from jax.experimental.pallas import tpu as pltpu

GAMMA = 2.0
ALPHA = 0.25
LANES = 128        # lane width (last dim)
SUBLANES = 8       # sublane tile (second-to-last dim granularity)
TARGET_BLOCK_BYTES = 2 * 1024 * 1024  # ~2 MiB per input block
VMEM_LIMIT_BYTES = 32 * 1024 * 1024   # safe on v5e / v6e / v7x


def _round_up(n, m):
    return ((n + m - 1) // m) * m


def _num_tensorcores():
    """2 only for chips whose JAX device exposes two TensorCores (megacore)."""
    try:
        kind = jax.devices()[0].device_kind.lower()
    except Exception:
        return 1
    if "lite" in kind:                       # v4i / v5e-style inference chips
        return 1
    if any(tag in kind for tag in ("v4", "v5p", "7x", "v7")):
        return 2
    return 1                                 # v2/v3/v5e/v6e or unknown -> safe


def _focal_kernel(x_ref, t_ref, o_ref, *, gamma, total, block_rows,
                  blocks_per_core, need_mask, binary_targets):
    i = pl.program_id(1)  # reduction-axis step within this core's block range

    # Zero the resident output block at the start of each core's range.
    @pl.when(i == 0)
    def _():
        o_ref[...] = jnp.zeros_like(o_ref)

    x = x_ref[...].astype(jnp.float32)
    t = t_ref[...].astype(jnp.float32)

    # Numerically stable BCE-with-logits (matches F.binary_cross_entropy_with_logits):
    #   bce = max(x, 0) - x*t + log1p(exp(-|x|))
    e = jnp.exp(-jnp.abs(x))
    bce = jnp.maximum(x, 0.0) - x * t + jnp.log1p(e)

    if binary_targets:
        # pt = exp(-bce) = sigmoid(x) if t==1 else 1-sigmoid(x).  Reuses e, so no
        # third transcendental.  Exact for binary targets (the intended use of
        # BinaryFocalLoss); set binary_targets=False for soft labels.
        same = (x >= 0.0) == (t >= 0.5)
        pt = jnp.where(same, 1.0, e) / (1.0 + e)
    else:
        pt = jnp.exp(-bce)

    one_minus_pt = 1.0 - pt
    # gamma == 2.0 here: plain multiply instead of a float pow (exp(log(.)) on EUP).
    if float(gamma) == 2.0:
        mod = one_minus_pt * one_minus_pt
    elif float(gamma) == int(gamma):
        mod = jax.lax.integer_pow(one_minus_pt, int(gamma))
    else:
        mod = one_minus_pt ** gamma

    focal = mod * bce  # alpha folded into the wrapper-side final scale

    def accumulate(vals):
        # (8,128) vreg-shaped partial-sum accumulation: pure VPU adds per step;
        # the single cross-lane/sublane reduce + mean happens once in the wrapper.
        v3 = vals.reshape(block_rows // SUBLANES, SUBLANES, LANES)
        o_ref[...] += jnp.sum(v3, axis=0).reshape(1, SUBLANES, LANES)

    if not need_mask:
        accumulate(focal)
    else:
        c = pl.program_id(0)
        start_row = (c * blocks_per_core + i) * block_rows
        full_rows = total // LANES   # rows that are completely valid
        rem = total % LANES          # valid lanes in the single partial row
        block_fully_valid = start_row + block_rows <= full_rows

        @pl.when(block_fully_valid)
        def _():
            accumulate(focal)

        # Only the boundary block pays for the mask (row/lane compare: no int32
        # flat-index overflow for huge inputs).
        @pl.when(jnp.logical_not(block_fully_valid))
        def _():
            g = start_row + jax.lax.broadcasted_iota(jnp.int32, focal.shape, 0)
            l = jax.lax.broadcasted_iota(jnp.int32, focal.shape, 1)
            valid = (g < full_rows) | ((g == full_rows) & (l < rem))
            accumulate(jnp.where(valid, focal, 0.0))


def binary_focal_loss(logits, targets, gamma=GAMMA, alpha=ALPHA,
                      binary_targets=True):
    """Mean binary focal loss over all elements. Returns a float32 scalar."""
    assert logits.shape == targets.shape
    total = logits.size
    assert total > 0

    x = logits.reshape(-1)
    t = targets.reshape(-1)

    # Minimal padding: only to the next multiple of 8*128 elements and only if
    # needed (no extra HBM pass for the common aligned shapes).  The rest of the
    # boundary is a Pallas partial final block handled by the in-kernel tail mask.
    chunk = SUBLANES * LANES
    padded = _round_up(total, chunk)
    if padded != total:
        x = jnp.pad(x, (0, padded - total))
        t = jnp.pad(t, (0, padded - total))
    rows = padded // LANES  # multiple of SUBLANES

    # Keep the native dtype (no wrapper upcast); kernel casts to f32 internally.
    x2d = x.reshape(rows, LANES)
    t2d = t.reshape(rows, LANES)

    itemsize = max(jnp.dtype(x.dtype).itemsize, jnp.dtype(t.dtype).itemsize)
    max_block_rows = max(
        SUBLANES,
        (TARGET_BLOCK_BYTES // (LANES * itemsize)) // SUBLANES * SUBLANES)

    ncores = _num_tensorcores()

    def partition(nc):
        per_core = pl.cdiv(rows, nc)
        bpc = max(1, pl.cdiv(per_core, max_block_rows))
        br = min(rows, _round_up(pl.cdiv(per_core, bpc), SUBLANES))
        return bpc, br

    blocks_per_core, block_rows = partition(ncores)
    # Every block's start row must lie inside the array, so only the final block
    # can be a (Pallas-handled) partial boundary block.
    if ncores > 1 and (ncores * blocks_per_core - 1) * block_rows >= rows:
        ncores = 1
        blocks_per_core, block_rows = partition(1)
    if (blocks_per_core - 1) * block_rows >= rows:  # safety for extreme sizes
        ncores = 1
        block_rows = min(rows, max_block_rows)
        blocks_per_core = pl.cdiv(rows, block_rows)

    coverage = ncores * blocks_per_core * block_rows * LANES
    need_mask = coverage != total

    kernel = functools.partial(
        _focal_kernel, gamma=gamma, total=total, block_rows=block_rows,
        blocks_per_core=blocks_per_core, need_mask=need_mask,
        binary_targets=binary_targets)

    in_map = lambda c, i: (c * blocks_per_core + i, 0)

    partials = pl.pallas_call(
        kernel,
        out_shape=jax.ShapeDtypeStruct((ncores, SUBLANES, LANES), jnp.float32),
        grid_spec=pltpu.PrefetchScalarGridSpec(
            num_scalar_prefetch=0,
            grid=(ncores, blocks_per_core),
            in_specs=[
                pl.BlockSpec((block_rows, LANES), in_map),
                pl.BlockSpec((block_rows, LANES), in_map),
            ],
            out_specs=pl.BlockSpec((1, SUBLANES, LANES), lambda c, i: (c, 0, 0)),
        ),
        compiler_params=pltpu.CompilerParams(
            dimension_semantics=("parallel", "arbitrary"),
            vmem_limit_bytes=VMEM_LIMIT_BYTES),
    )(x2d, t2d)

    # Single cross-lane/sublane reduction + mean + alpha, once, outside the loop.
    return jnp.sum(partials) * jnp.float32(alpha / total)


def _reference(logits, targets, gamma=GAMMA, alpha=ALPHA):
    x = logits.astype(jnp.float32)
    t = targets.astype(jnp.float32)
    bce = jnp.maximum(x, 0.0) - x * t + jnp.log1p(jnp.exp(-jnp.abs(x)))
    pt = jnp.exp(-bce)
    return jnp.mean(alpha * (1.0 - pt) ** gamma * bce)


if __name__ == "__main__":
    key = jax.random.PRNGKey(0)
    k1, k2, k3, k4 = jax.random.split(key, 4)

    # NCHW, small shapes: batch=2, channels=4, spatial=16x16 (aligned path).
    logits = jax.random.normal(k1, (2, 4, 16, 16), dtype=jnp.float32)
    targets = (jax.random.uniform(k2, (2, 4, 16, 16)) > 0.5).astype(jnp.float32)
    loss = jax.block_until_ready(binary_focal_loss(logits, targets))
    ref = _reference(logits, targets)
    assert jnp.allclose(loss, ref, rtol=1e-5, atol=1e-6), (loss, ref)

    # Unaligned shape: exercises the partial-block / gated tail-mask path.
    logits2 = jax.random.normal(k3, (3, 5, 7, 11), dtype=jnp.float32)
    targets2 = (jax.random.uniform(k4, (3, 5, 7, 11)) > 0.5).astype(jnp.float32)
    loss2 = jax.block_until_ready(binary_focal_loss(logits2, targets2))
    ref2 = _reference(logits2, targets2)
    assert jnp.allclose(loss2, ref2, rtol=1e-5, atol=1e-6), (loss2, ref2)

    print("KERNEL_OK")
</pallas_src>

<mosaic_0001>
module attributes {stable_mosaic.version = 11 : i64} {
  func.func @_focal_kernel(%arg0: i32, %arg1: i32, %arg2: memref<16x128xf32, #tpu.memory_space<vmem>>, %arg3: memref<16x128xf32, #tpu.memory_space<vmem>>, %arg4: memref<1x8x128xf32, #tpu.memory_space<vmem>>) attributes {dimension_semantics = [#tpu.dimension_semantics<parallel>, #tpu.dimension_semantics<arbitrary>], iteration_bounds = array<i64: 1, 1>, scalar_prefetch = 0 : i64, scratch_operands = 0 : i64, tpu.core_type = #tpu.core_type<tc>, window_params = [{transform_indices = @transform_0, window_bounds = array<i64: 16, 128>}, {transform_indices = @transform_1, window_bounds = array<i64: 16, 128>}, {transform_indices = @transform_2, window_bounds = array<i64: 1, 8, 128>}]} {
    %c0_i32 = arith.constant 0 : i32
    %0 = arith.cmpi eq, %arg1, %c0_i32 : i32
    %1 = arith.extui %0 : i1 to i32
    %c0_i32_0 = arith.constant 0 : i32
    %2 = arith.cmpi ne, %1, %c0_i32_0 : i32
    scf.if %2 {
      %cst_18 = arith.constant 0.000000e+00 : f32
      %36 = vector.broadcast %cst_18 : f32 to vector<1x8x128xf32>
      %c0_19 = arith.constant 0 : index
      %c0_20 = arith.constant 0 : index
      %c0_21 = arith.constant 0 : index
      %37 = vector.load %arg4[%c0_19, %c0_20, %c0_21] : memref<1x8x128xf32, #tpu.memory_space<vmem>>, vector<1x8x128xf32>
      tpu.vector_store %arg4[%c0_19, %c0_20, %c0_21], %36 {strides = array<i32>} : memref<1x8x128xf32, #tpu.memory_space<vmem>>, vector<1x8x128xf32>,
    } else {
    }
    %c0 = arith.constant 0 : index
    %c0_1 = arith.constant 0 : index
    %3 = vector.load %arg2[%c0, %c0_1] : memref<16x128xf32, #tpu.memory_space<vmem>>, vector<16x128xf32>
    %c0_2 = arith.constant 0 : index
    %c0_3 = arith.constant 0 : index
    %4 = vector.load %arg3[%c0_2, %c0_3] : memref<16x128xf32, #tpu.memory_space<vmem>>, vector<16x128xf32>
    %5 = math.absf %3 : vector<16x128xf32>
    %cst = arith.constant 0.000000e+00 : f32
    %6 = vector.broadcast %cst : f32 to vector<16x128xf32>
    %7 = arith.subf %6, %5 : vector<16x128xf32>
    %8 = math.exp %7 : vector<16x128xf32>
    %cst_4 = arith.constant 0.000000e+00 : f32
    %9 = vector.broadcast %cst_4 : f32 to vector<16x128xf32>
    %10 = arith.maximumf %3, %9 : vector<16x128xf32>
    %11 = arith.mulf %3, %4 : vector<16x128xf32>
    %12 = arith.subf %10, %11 : vector<16x128xf32>
    %13 = math.log1p %8 : vector<16x128xf32>
    %14 = arith.addf %12, %13 : vector<16x128xf32>
    %cst_5 = arith.constant 0.000000e+00 : f32
    %15 = vector.broadcast %cst_5 : f32 to vector<16x128xf32>
    %16 = arith.cmpf oge, %3, %15 : vector<16x128xf32>
    %cst_6 = arith.constant 5.000000e-01 : f32
    %17 = vector.broadcast %cst_6 : f32 to vector<16x128xf32>
    %18 = arith.cmpf oge, %4, %17 : vector<16x128xf32>
    %19 = arith.xori %16, %18 : vector<16x128xi1>
    %cst_7 = arith.constant dense<true> : vector<16x128xi1>
    %20 = arith.xori %19, %cst_7 : vector<16x128xi1>
    %cst_8 = arith.constant 1.000000e+00 : f32
    %21 = vector.broadcast %cst_8 : f32 to vector<16x128xf32>
    %22 = arith.select %20, %21, %8 : vector<16x128xi1>, vector<16x128xf32>
    %cst_9 = arith.constant 1.000000e+00 : f32
    %23 = vector.broadcast %cst_9 : f32 to vector<16x128xf32>
    %24 = arith.addf %23, %8 : vector<16x128xf32>
    %25 = arith.divf %22, %24 : vector<16x128xf32>
    %cst_10 = arith.constant 1.000000e+00 : f32
    %26 = vector.broadcast %cst_10 : f32 to vector<16x128xf32>
    %27 = arith.subf %26, %25 : vector<16x128xf32>
    %28 = arith.mulf %27, %27 : vector<16x128xf32>
    %29 = arith.mulf %28, %14 : vector<16x128xf32>
    %30 = vector.shape_cast %29 : vector<16x128xf32> to vector<2x8x128xf32>
    %c0_11 = arith.constant 0 : index
    %c0_12 = arith.constant 0 : index
    %c0_13 = arith.constant 0 : index
    %31 = vector.load %arg4[%c0_11, %c0_12, %c0_13] : memref<1x8x128xf32, #tpu.memory_space<vmem>>, vector<1x8x128xf32>
    %cst_14 = arith.constant dense<0.000000e+00> : vector<8x128xf32>
    %32 = vector.multi_reduction <add>, %30, %cst_14 [0] : vector<2x8x128xf32> to vector<8x128xf32>
    %33 = vector.shape_cast %32 : vector<8x128xf32> to vector<1x8x128xf32>
    %34 = arith.addf %31, %33 : vector<1x8x128xf32>
    %c0_15 = arith.constant 0 : index
    %c0_16 = arith.constant 0 : index
    %c0_17 = arith.constant 0 : index
    %35 = vector.load %arg4[%c0_15, %c0_16, %c0_17] : memref<1x8x128xf32, #tpu.memory_space<vmem>>, vector<1x8x128xf32>
    tpu.vector_store %arg4[%c0_15, %c0_16, %c0_17], %34 {strides = array<i32>} : memref<1x8x128xf32, #tpu.memory_space<vmem>>, vector<1x8x128xf32>,
    return
  }
  func.func @transform_0(%arg0: i32, %arg1: i32) -> (i32, i32) {
    %c1_i32 = arith.constant 1 : i32
    %0 = arith.muli %arg0, %c1_i32 : i32
    %1 = arith.addi %0, %arg1 : i32
    %c0_i32 = arith.constant 0 : i32
    %c0_i32_0 = arith.constant 0 : i32
    return %1, %c0_i32 : i32, i32
  }
  func.func @transform_1(%arg0: i32, %arg1: i32) -> (i32, i32) {
    %c1_i32 = arith.constant 1 : i32
    %0 = arith.muli %arg0, %c1_i32 : i32
    %1 = arith.addi %0, %arg1 : i32
    %c0_i32 = arith.constant 0 : i32
    %c0_i32_0 = arith.constant 0 : i32
    return %1, %c0_i32 : i32, i32
  }
  func.func @transform_2(%arg0: i32, %arg1: i32) -> (i32, i32, i32) {
    %c0_i32 = arith.constant 0 : i32
    %c0_i32_0 = arith.constant 0 : i32
    %c0_i32_1 = arith.constant 0 : i32
    return %arg0, %c0_i32, %c0_i32_0 : i32, i32, i32
  }
}

</mosaic_0001>

<llo_original>
// kernel: tpu_custom_call.1
$region0: #{tpu_custom_call.1}
  #allocation0 [shape = 'u32[]', space=smem, size = 0x4, offset = 0x4, fixed_abs, tag = 'smem constant byte address 0x4 - core index']
  #allocation1 [shape = 'u32[144,128]{1,0:T(1,128)}', space=vmem, size = 0x12000, scoped, tag = 'internal scratch']
  %s0 = inlined_call_operand.hbm [shape: f32[16,128], index: 0, kind: input, shape index: {}]
  %s1 = inlined_call_operand.hbm [shape: f32[16,128], index: 1, kind: input, shape index: {}]
  %s2 = inlined_call_operand.hbm [shape: f32[1,8,128], index: 2, kind: output, shape index: {}]
  %s3 = sld [smem:[#allocation0]]
  $region30: #{tpu_custom_call.1} parent=0
    _
  %s5 = ssub.s32 1, %s3
  %s6 = scalar_select 0, %s5, %s3
  $region1: #{tpu_custom_call.1} parent=0
    #allocation2 [shape = 'u8[8192]{0}', space=vmem, size = 0x2000, scoped, tag = 'input window, operand 0, single buffered']
    #allocation3 [shape = 's32[1]{0}', space=sflag, size = 0x4, scoped, tag = 'scoped memory for tpu_custom_call.1']
    #allocation4 [shape = 's32[1]{0}', space=sflag, size = 0x4, scoped, tag = 'scoped memory for tpu_custom_call.1']
    #allocation5 [shape = 'u8[8192]{0}', space=vmem, size = 0x2000, scoped, tag = 'input window, operand 1, single buffered']
    #allocation6 [shape = 's32[1]{0}', space=sflag, size = 0x4, scoped, tag = 'scoped memory for tpu_custom_call.1']
    #allocation7 [shape = 'u8[4096]{0}', space=vmem, size = 0x1000, scoped, tag = 'output window, operand 0, single buffered']
    %7 = vsyncpa [#allocation3], 0
    %8 = vsyncpa [#allocation6], 0
    %9 = vsyncpa [#allocation4], 0
    // Predicated region
    $region2: #{tpu_custom_call.1} parent=1 // pred_check
      _
    $region3: #{tpu_custom_call.1} parent=1 // pred_check_branch
      %11 = sbr.rel (0) target = $region5
    $region4: #{tpu_custom_call.1} parent=1 // pred_region
      %s12 = sadd.s32 0, 0
      %s13 = smul.u32 2, %s12
      %s15 = ssub.s32 256, 256
      %16 = vsyncadd [#allocation3], %s15
      %s17 = smul.addr %s13, 128
      %s18 = scalar_lea.hbm %s0, %s17
      %s19 = sshll.u32 [#allocation2], 4
      %s20 = int_to_ptr.vmem [resolvable:$true] %s19
      %25 = dma.hbm_to_vmem [thread:$0]  %s18, 256, %s20, [#allocation3], 128, 128, 8
    $region5: #{tpu_custom_call.1} parent=1 // pred_fallthru
      _
    // Predicated region
    $region6: #{tpu_custom_call.1} parent=1 // pred_check
      _
    $region7: #{tpu_custom_call.1} parent=1 // pred_check_branch
      %27 = sbr.rel (0) target = $region9
    $region8: #{tpu_custom_call.1} parent=1 // pred_region
      %s28 = sadd.s32 0, 0
      %s29 = smul.u32 2, %s28
      %s31 = ssub.s32 256, 256
      %32 = vsyncadd [#allocation6], %s31
      %s33 = smul.addr %s29, 128
      %s34 = scalar_lea.hbm %s1, %s33
      %s35 = sshll.u32 [#allocation5], 4
      %s36 = int_to_ptr.vmem [resolvable:$true] %s35
      %41 = dma.hbm_to_vmem [thread:$0]  %s34, 256, %s36, [#allocation6], 128, 128, 8
    $region9: #{tpu_custom_call.1} parent=1 // pred_fallthru
      _
    // Predicated region
    $region10: #{tpu_custom_call.1} parent=1 // pred_check
      _
    $region11: #{tpu_custom_call.1} parent=1 // pred_check_branch
      %43 = sbr.rel (0) target = $region13
    $region12: #{tpu_custom_call.1} parent=1 // pred_region
      %44 = dma.done [#allocation3], 256
    $region13: #{tpu_custom_call.1} parent=1 // pred_fallthru
      _
    // Predicated region
    $region14: #{tpu_custom_call.1} parent=1 // pred_check
      _
    $region15: #{tpu_custom_call.1} parent=1 // pred_check_branch
      %46 = sbr.rel (0) target = $region17
    $region16: #{tpu_custom_call.1} parent=1 // pred_region
      %47 = dma.done [#allocation6], 256
    $region17: #{tpu_custom_call.1} parent=1 // pred_fallthru
      _
    %s48 = sadd.s32 0, 0
    %s49 = smul.u32 2, %s48
    %s50 = sadd.s32 0, 0
    %s51 = smul.u32 2, %s50
    %p52 = scmp.eq.s32.totalorder 0, 0
    // Predicated region
    $region18: #{tpu_custom_call.1} parent=1 // pred_check
      %p53 = pneg %p52
    $region19: #{tpu_custom_call.1} parent=1 // pred_check_branch
      %55 = sbr.rel (%p53) target = $region21
    $region20: #{tpu_custom_call.1} parent=1 // pred_region
      %56 = vst [vmem:[#allocation7] sm:$0xff] 0.0
    $region21: #{tpu_custom_call.1} parent=1 // pred_fallthru
      _
    %v57 = vld [vmem:[#allocation2] sm:$0xff]
    %v58 = vld [vmem:[#allocation2 + $0x8] sm:$0xff]
    %v59 = vld [vmem:[#allocation5] sm:$0xff]
    %v60 = vld [vmem:[#allocation5 + $0x8] sm:$0xff]
    %v61 = vand.u32 2147483647, %v57
    %v62 = vand.u32 2147483647, %v58
    %v63 = vsub.f32 0.0, %v61
    %v64 = vsub.f32 0.0, %v62
    %v65 = vmul.f32 %v63, 1.442695
    %v66 = vpow.pop %v65
    %v67 = vmul.f32 %v64, 1.442695
    %v68 = vpow.pop %v67
    %v69 = vmax.f32 %v57, 0.0
    %v70 = vmax.f32 %v58, 0.0
    %v71 = vmul.f32 %v57, %v59
    %v72 = vmul.f32 %v58, %v60
    %v73 = vsub.f32 %v69, %v71
    %v74 = vsub.f32 %v70, %v72
    %v75 = vadd.f32 %v66, 1.0
    %v76 = vlog2.pop %v75
    %v77 = vmul.f32 %v76, 0.6931472
    %v78 = vmul.f32 -0.5, %v66
    %v79 = vadd.f32 %v78, 1.0
    %v80 = vmul.f32 %v79, %v66
    %v81 = vand.u32 2147483647, %v66
    %vm82 = vcmp.lt.f32.partialorder %v81, 0.0004427343
    %v83 = vsel %vm82, %v80, %v77
    %v84 = vadd.f32 %v68, 1.0
    %v85 = vlog2.pop %v84
    %v86 = vmul.f32 %v85, 0.6931472
    %v87 = vmul.f32 -0.5, %v68
    %v88 = vadd.f32 %v87, 1.0
    %v89 = vmul.f32 %v88, %v68
    %v90 = vand.u32 2147483647, %v68
    %vm91 = vcmp.lt.f32.partialorder %v90, 0.0004427343
    %v92 = vsel %vm91, %v89, %v86
    %v93 = vadd.f32 %v73, %v83
    %v94 = vadd.f32 %v74, %v92
    %vm95 = vcmp.ge.f32.partialorder %v57, 0.0
    %vm96 = vcmp.ge.f32.partialorder %v58, 0.0
    %vm97 = vcmp.ge.f32.partialorder %v59, 0.5
    %vm98 = vcmp.ge.f32.partialorder %v60, 0.5
    %vm99 = vmxor %vm95, %vm97
    %vm100 = vmxor %vm96, %vm98
    %vm101 = vmxor %vm99, 1
    %vm102 = vmxor %vm100, 1
    %v103 = vsel %vm101, 1.0, %v66
    %v104 = vsel %vm102, 1.0, %v68
    %v105 = vadd.f32 %v66, 1.0
    %v106 = vadd.f32 %v68, 1.0
    %v107 = vrcp.pop %v105
    %v108 = vmul.f32 %v103, %v107
    %v109 = vrcp.pop %v106
    %v110 = vmul.f32 %v104, %v109
    %v111 = vsub.f32 1.0, %v108
    %v112 = vsub.f32 1.0, %v110
    %v113 = vmul.f32 %v111, %v111
    %v114 = vmul.f32 %v112, %v112
    %v115 = vmul.f32 %v113, %v93
    %v116 = vmul.f32 %v114, %v94
    %v117 = vld [vmem:[#allocation7] sm:$0xff]
    %v118 = vadd.f32 %v115, %v116
    %v119 = vadd.f32 %v117, %v118
    %120 = vst [vmem:[#allocation7] sm:$0xff] %v119
    // Predicated region
    $region22: #{tpu_custom_call.1} parent=1 // pred_check
      _
    $region23: #{tpu_custom_call.1} parent=1 // pred_check_branch
      %122 = sbr.rel (0) target = $region25
    $region24: #{tpu_custom_call.1} parent=1 // pred_region
      %s124 = ssub.s32 128, 128
      %125 = vsyncadd [#allocation4], %s124
      %s127 = sshll.u32 [#allocation7], 4
      %s128 = int_to_ptr.vmem [resolvable:$true] %s127
      %130 = dma.vmem_to_hbm [thread:$0]  %s128, 128, %s2, [#allocation4]
    $region25: #{tpu_custom_call.1} parent=1 // pred_fallthru
      _
    // Predicated region
    $region26: #{tpu_custom_call.1} parent=1 // pred_check
      _
    $region27: #{tpu_custom_call.1} parent=1 // pred_check_branch
      %132 = sbr.rel (0) target = $region29
    $region28: #{tpu_custom_call.1} parent=1 // pred_region
      %133 = dma.done [#allocation4], 128
    $region29: #{tpu_custom_call.1} parent=1 // pred_fallthru
      _
    %134 = vsyncpa [#allocation3], 1
    %135 = vsyncpa [#allocation6], 1
    %136 = vsyncpa [#allocation4], 1

</llo_original>
